<compile_context>
chip_gen: v6e
topology: v6e:2x2x1
jax: 0.10.0
libtpu: 0.0.40
codegen_flags: <defaults>
</compile_context>

<pallas_src>
import jax
import jax.numpy as jnp
import numpy as np
from jax import lax
from jax.experimental import pallas as pl
from jax.experimental.pallas import tpu as pltpu


def _contrast_loss_kernel(radar_ref, optical_ref, wr_ref, br_ref,
                          wo_ref, bo_ref, ls_ref, loss_ref):
    # Contract the last dim of both operands (no transposes materialized).
    dn_feat = (((1,), (1,)), ((), ()))

    # --- projections (MXU): x[B, Din] . W[Dout, Din]^T -> [B, Dout] ---
    r = lax.dot_general(radar_ref[...], wr_ref[...], dn_feat,
                        preferred_element_type=jnp.float32) + br_ref[...]
    o = lax.dot_general(optical_ref[...], wo_ref[...], dn_feat,
                        preferred_element_type=jnp.float32) + bo_ref[...]

    # --- L2 normalize along feature dim (dim=1).
    # Matches torch `x / x.norm(dim=1, keepdim=True)` (no eps in the reference module).
    r = r * lax.rsqrt(jnp.sum(r * r, axis=1, keepdims=True))
    o = o * lax.rsqrt(jnp.sum(o * o, axis=1, keepdims=True))

    scale = jnp.exp(ls_ref[0])  # scalar from SMEM

    # --- single BxB similarity matrix: L[i, j] = scale * <o_i, r_j> ---
    # logits_per_optical == L ; logits_per_radar == L.T
    logits = scale * lax.dot_general(o, r, dn_feat,
                                     preferred_element_type=jnp.float32)
    B = logits.shape[0]

    # Diagonal is identical for both CE terms: scale * <o_i, r_i>.
    diag = scale * jnp.sum(o * r, axis=1, keepdims=True)                 # (B, 1)

    # optical CE: logsumexp over rows of L.
    m_row = jnp.max(logits, axis=1, keepdims=True)                       # (B, 1)
    lse_row = m_row + jnp.log(jnp.sum(jnp.exp(logits - m_row),
                                      axis=1, keepdims=True))            # (B, 1)

    # radar CE: logsumexp over columns of L (== rows of L.T).
    m_col = jnp.max(logits, axis=0, keepdims=True)                       # (1, B)
    lse_col = m_col + jnp.log(jnp.sum(jnp.exp(logits - m_col),
                                      axis=0, keepdims=True))            # (1, B)

    sum_lse_row = jnp.sum(lse_row, axis=0, keepdims=True)                # (1, 1)
    sum_lse_col = jnp.sum(lse_col, axis=1, keepdims=True)                # (1, 1)
    sum_diag = jnp.sum(diag, axis=0, keepdims=True)                      # (1, 1)

    # loss = 0.5 * (mean(lse_row - diag) + mean(lse_col - diag))
    loss_ref[...] = 0.5 * (sum_lse_row + sum_lse_col - 2.0 * sum_diag) * (1.0 / B)


def contrast_loss_input(radar_features, optical_features,
                        w_radar, b_radar, w_optical, b_optical, logit_scale):
    """Forward pass of ContrastLossInput (world_size=1, rank=0). Returns scalar loss."""
    vmem = pl.BlockSpec(memory_space=pltpu.MemorySpace.VMEM)
    smem = pl.BlockSpec(memory_space=pltpu.MemorySpace.SMEM)
    out = pl.pallas_call(
        _contrast_loss_kernel,
        out_shape=jax.ShapeDtypeStruct((1, 1), jnp.float32),
        in_specs=[vmem, vmem, vmem, vmem, vmem, vmem, smem],
        out_specs=vmem,
    )(
        radar_features.astype(jnp.float32),
        optical_features.astype(jnp.float32),
        w_radar.astype(jnp.float32),                 # PyTorch [out, in], no host transpose
        b_radar.reshape(1, -1).astype(jnp.float32),
        w_optical.astype(jnp.float32),               # PyTorch [out, in]
        b_optical.reshape(1, -1).astype(jnp.float32),
        jnp.reshape(logit_scale, (1,)).astype(jnp.float32),
    )
    return out[0, 0]


def _reference_loss(radar, optical, w_r, b_r, w_o, b_o, ls):
    r = radar @ w_r.T + b_r
    o = optical @ w_o.T + b_o
    r = r / jnp.linalg.norm(r, axis=1, keepdims=True)
    o = o / jnp.linalg.norm(o, axis=1, keepdims=True)
    scale = jnp.exp(ls)
    lo = scale * o @ r.T
    lr = scale * r @ o.T
    n = lo.shape[0]
    idx = jnp.arange(n)

    def ce(lg):
        return jnp.mean(jax.nn.logsumexp(lg, axis=1) - lg[idx, idx])

    return 0.5 * (ce(lo) + ce(lr))


if __name__ == "__main__":
    # Small shapes consistent with the module: batch=8, projection_input=32, projection_output=32.
    B, D_IN, D_OUT = 8, 32, 32

    key = jax.random.PRNGKey(0)
    k1, k2, k3, k4, k5, k6 = jax.random.split(key, 6)

    radar_features = jax.random.normal(k1, (B, D_IN), dtype=jnp.float32)
    optical_features = jax.random.normal(k2, (B, D_IN), dtype=jnp.float32)

    # Deterministic parameter init (PyTorch nn.Linear stores weight as [out, in]).
    w_radar = jax.random.normal(k3, (D_OUT, D_IN), dtype=jnp.float32) * 0.02
    b_radar = jax.random.normal(k4, (D_OUT,), dtype=jnp.float32) * 0.01
    w_optical = jax.random.normal(k5, (D_OUT, D_IN), dtype=jnp.float32) * 0.02
    b_optical = jax.random.normal(k6, (D_OUT,), dtype=jnp.float32) * 0.01
    logit_scale = jnp.asarray(np.log(1.0 / 0.07), dtype=jnp.float32)

    loss = contrast_loss_input(radar_features, optical_features,
                               w_radar, b_radar, w_optical, b_optical, logit_scale)
    loss = jax.block_until_ready(loss)

    ref = _reference_loss(radar_features, optical_features,
                          w_radar, b_radar, w_optical, b_optical, logit_scale)
    ref = jax.block_until_ready(ref)

    assert np.isfinite(float(loss))
    np.testing.assert_allclose(float(loss), float(ref), rtol=1e-4, atol=1e-4)
    print("KERNEL_OK")
</pallas_src>

<mosaic_0001>
module attributes {stable_mosaic.version = 11 : i64} {
  func.func @_contrast_loss_kernel(%arg0: memref<8x32xf32, #tpu.memory_space<vmem>>, %arg1: memref<8x32xf32, #tpu.memory_space<vmem>>, %arg2: memref<32x32xf32, #tpu.memory_space<vmem>>, %arg3: memref<1x32xf32, #tpu.memory_space<vmem>>, %arg4: memref<32x32xf32, #tpu.memory_space<vmem>>, %arg5: memref<1x32xf32, #tpu.memory_space<vmem>>, %arg6: memref<1xf32, #tpu.memory_space<smem>>, %arg7: memref<1x1xf32, #tpu.memory_space<vmem>>) attributes {dimension_semantics = [], scalar_prefetch = 0 : i64, scratch_operands = 0 : i64, tpu.core_type = #tpu.core_type<tc>} {
    %c0 = arith.constant 0 : index
    %c0_0 = arith.constant 0 : index
    %0 = vector.load %arg0[%c0, %c0_0] : memref<8x32xf32, #tpu.memory_space<vmem>>, vector<8x32xf32>
    %c0_1 = arith.constant 0 : index
    %c0_2 = arith.constant 0 : index
    %1 = vector.load %arg2[%c0_1, %c0_2] : memref<32x32xf32, #tpu.memory_space<vmem>>, vector<32x32xf32>
    %cst = arith.constant dense<0.000000e+00> : vector<8x32xf32>
    %2 = tpu.matmul %0, %1, %cst {dimension_numbers = #tpu.dot_dimension_numbers<[1], [1], [0], [0], [0, 0, 1, 0], [], []>} : vector<8x32xf32>, vector<32x32xf32>, vector<8x32xf32> -> vector<8x32xf32>
    %c0_3 = arith.constant 0 : index
    %c0_4 = arith.constant 0 : index
    %3 = vector.load %arg3[%c0_3, %c0_4] : memref<1x32xf32, #tpu.memory_space<vmem>>, vector<1x32xf32>
    %4 = vector.broadcast %3 : vector<1x32xf32> to vector<8x32xf32>
    %5 = arith.addf %2, %4 : vector<8x32xf32>
    %c0_5 = arith.constant 0 : index
    %c0_6 = arith.constant 0 : index
    %6 = vector.load %arg1[%c0_5, %c0_6] : memref<8x32xf32, #tpu.memory_space<vmem>>, vector<8x32xf32>
    %c0_7 = arith.constant 0 : index
    %c0_8 = arith.constant 0 : index
    %7 = vector.load %arg4[%c0_7, %c0_8] : memref<32x32xf32, #tpu.memory_space<vmem>>, vector<32x32xf32>
    %cst_9 = arith.constant dense<0.000000e+00> : vector<8x32xf32>
    %8 = tpu.matmul %6, %7, %cst_9 {dimension_numbers = #tpu.dot_dimension_numbers<[1], [1], [0], [0], [0, 0, 1, 0], [], []>} : vector<8x32xf32>, vector<32x32xf32>, vector<8x32xf32> -> vector<8x32xf32>
    %c0_10 = arith.constant 0 : index
    %c0_11 = arith.constant 0 : index
    %9 = vector.load %arg5[%c0_10, %c0_11] : memref<1x32xf32, #tpu.memory_space<vmem>>, vector<1x32xf32>
    %10 = vector.broadcast %9 : vector<1x32xf32> to vector<8x32xf32>
    %11 = arith.addf %8, %10 : vector<8x32xf32>
    %12 = arith.mulf %5, %5 : vector<8x32xf32>
    %cst_12 = arith.constant dense<0.000000e+00> : vector<8xf32>
    %13 = vector.multi_reduction <add>, %12, %cst_12 [1] : vector<8x32xf32> to vector<8xf32>
    %14 = vector.shape_cast %13 : vector<8xf32> to vector<8x1xf32>
    %15 = math.rsqrt %14 : vector<8x1xf32>
    %16 = vector.broadcast %15 : vector<8x1xf32> to vector<8x32xf32>
    %17 = arith.mulf %5, %16 : vector<8x32xf32>
    %18 = arith.mulf %11, %11 : vector<8x32xf32>
    %cst_13 = arith.constant dense<0.000000e+00> : vector<8xf32>
    %19 = vector.multi_reduction <add>, %18, %cst_13 [1] : vector<8x32xf32> to vector<8xf32>
    %20 = vector.shape_cast %19 : vector<8xf32> to vector<8x1xf32>
    %21 = math.rsqrt %20 : vector<8x1xf32>
    %22 = vector.broadcast %21 : vector<8x1xf32> to vector<8x32xf32>
    %23 = arith.mulf %11, %22 : vector<8x32xf32>
    %c0_14 = arith.constant 0 : index
    %24 = memref.load %arg6[%c0_14] : memref<1xf32, #tpu.memory_space<smem>>
    %25 = math.exp %24 : f32
    %cst_15 = arith.constant dense<0.000000e+00> : vector<8x8xf32>
    %26 = tpu.matmul %23, %17, %cst_15 {dimension_numbers = #tpu.dot_dimension_numbers<[1], [1], [0], [0], [0, 0, 1, 0], [], []>} : vector<8x32xf32>, vector<8x32xf32>, vector<8x8xf32> -> vector<8x8xf32>
    %27 = vector.broadcast %25 : f32 to vector<8x8xf32>
    %28 = arith.mulf %27, %26 : vector<8x8xf32>
    %29 = arith.mulf %23, %17 : vector<8x32xf32>
    %cst_16 = arith.constant dense<0.000000e+00> : vector<8xf32>
    %30 = vector.multi_reduction <add>, %29, %cst_16 [1] : vector<8x32xf32> to vector<8xf32>
    %31 = vector.shape_cast %30 : vector<8xf32> to vector<8x1xf32>
    %32 = vector.broadcast %25 : f32 to vector<8x1xf32>
    %33 = arith.mulf %32, %31 : vector<8x1xf32>
    %cst_17 = arith.constant dense<0xFF800000> : vector<8xf32>
    %34 = vector.multi_reduction <maximumf>, %28, %cst_17 [1] : vector<8x8xf32> to vector<8xf32>
    %35 = vector.shape_cast %34 : vector<8xf32> to vector<8x1xf32>
    %36 = vector.broadcast %35 : vector<8x1xf32> to vector<8x8xf32>
    %37 = arith.subf %28, %36 : vector<8x8xf32>
    %38 = math.exp %37 : vector<8x8xf32>
    %cst_18 = arith.constant dense<0.000000e+00> : vector<8xf32>
    %39 = vector.multi_reduction <add>, %38, %cst_18 [1] : vector<8x8xf32> to vector<8xf32>
    %40 = vector.shape_cast %39 : vector<8xf32> to vector<8x1xf32>
    %41 = math.log %40 : vector<8x1xf32>
    %42 = arith.addf %35, %41 : vector<8x1xf32>
    %cst_19 = arith.constant dense<0xFF800000> : vector<8xf32>
    %43 = vector.multi_reduction <maximumf>, %28, %cst_19 [0] : vector<8x8xf32> to vector<8xf32>
    %44 = vector.shape_cast %43 : vector<8xf32> to vector<1x8xf32>
    %45 = vector.broadcast %44 : vector<1x8xf32> to vector<8x8xf32>
    %46 = arith.subf %28, %45 : vector<8x8xf32>
    %47 = math.exp %46 : vector<8x8xf32>
    %cst_20 = arith.constant dense<0.000000e+00> : vector<8xf32>
    %48 = vector.multi_reduction <add>, %47, %cst_20 [0] : vector<8x8xf32> to vector<8xf32>
    %49 = vector.shape_cast %48 : vector<8xf32> to vector<1x8xf32>
    %50 = math.log %49 : vector<1x8xf32>
    %51 = arith.addf %44, %50 : vector<1x8xf32>
    %cst_21 = arith.constant dense<0.000000e+00> : vector<1xf32>
    %52 = vector.multi_reduction <add>, %42, %cst_21 [0] : vector<8x1xf32> to vector<1xf32>
    %53 = vector.shape_cast %52 : vector<1xf32> to vector<1x1xf32>
    %cst_22 = arith.constant dense<0.000000e+00> : vector<1xf32>
    %54 = vector.multi_reduction <add>, %51, %cst_22 [1] : vector<1x8xf32> to vector<1xf32>
    %55 = vector.shape_cast %54 : vector<1xf32> to vector<1x1xf32>
    %cst_23 = arith.constant dense<0.000000e+00> : vector<1xf32>
    %56 = vector.multi_reduction <add>, %33, %cst_23 [0] : vector<8x1xf32> to vector<1xf32>
    %57 = vector.shape_cast %56 : vector<1xf32> to vector<1x1xf32>
    %58 = arith.addf %53, %55 : vector<1x1xf32>
    %cst_24 = arith.constant 2.000000e+00 : f32
    %59 = vector.broadcast %cst_24 : f32 to vector<1x1xf32>
    %60 = arith.mulf %59, %57 : vector<1x1xf32>
    %61 = arith.subf %58, %60 : vector<1x1xf32>
    %cst_25 = arith.constant 5.000000e-01 : f32
    %62 = vector.broadcast %cst_25 : f32 to vector<1x1xf32>
    %63 = arith.mulf %62, %61 : vector<1x1xf32>
    %cst_26 = arith.constant 1.250000e-01 : f32
    %64 = vector.broadcast %cst_26 : f32 to vector<1x1xf32>
    %65 = arith.mulf %63, %64 : vector<1x1xf32>
    %c0_27 = arith.constant 0 : index
    %c0_28 = arith.constant 0 : index
    %66 = vector.load %arg7[%c0_27, %c0_28] : memref<1x1xf32, #tpu.memory_space<vmem>>, vector<1x1xf32>
    tpu.vector_store %arg7[%c0_27, %c0_28], %65 {strides = array<i32>} : memref<1x1xf32, #tpu.memory_space<vmem>>, vector<1x1xf32>,
    return
  }
}

</mosaic_0001>

<llo_original>
// kernel: tpu_custom_call.1
$region0: #{tpu_custom_call.1}
  #allocation0 [shape = 'u32[]', space=smem, size = 0x4, offset = 0x4, fixed_abs, tag = 'smem constant byte address 0x4 - core index']
  #allocation1 [shape = 'u32[144,128]{1,0:T(1,128)}', space=vmem, size = 0x12000, scoped, tag = 'internal scratch']
  #allocation2 [shape = 'f32[1]{0:T(128)S(6)}', space=smem, size = 0x200, scoped, tag = 'scoped memory for tpu_custom_call.1']
  %s0 = inlined_call_operand.hbm [shape: f32[8,32], index: 0, kind: input, shape index: {}]
  %s1 = inlined_call_operand.hbm [shape: f32[8,32], index: 1, kind: input, shape index: {}]
  %s2 = inlined_call_operand.hbm [shape: f32[32,32], index: 2, kind: input, shape index: {}]
  %s3 = inlined_call_operand.vmem [shape: f32[1,32], index: 3, kind: input, shape index: {}]
  %s4 = inlined_call_operand.hbm [shape: f32[32,32], index: 4, kind: input, shape index: {}]
  %s5 = inlined_call_operand.vmem [shape: f32[1,32], index: 5, kind: input, shape index: {}]
  %s6 = inlined_call_operand.<no memory space> [shape: f32[1], index: 6, kind: input, shape index: {}]
  %s7 = inlined_call_operand.hbm [shape: f32[1,1], index: 7, kind: output, shape index: {}]
  %s8 = sld [smem:[#allocation0]]
  $region54: #{tpu_custom_call.1} parent=0
    _
  %s10 = ssub.s32 1, %s8
  %s11 = scalar_select 0, %s10, %s8
  %12 = sst [smem:[#allocation2]] %s6
  $region1: #{tpu_custom_call.1} parent=0
    #allocation3 [shape = 'u8[4096]{0}', space=vmem, size = 0x1000, scoped, tag = 'input window, operand 0, single buffered']
    #allocation4 [shape = 's32[1]{0}', space=sflag, size = 0x4, scoped, tag = 'scoped memory for tpu_custom_call.1']
    #allocation5 [shape = 's32[1]{0}', space=sflag, size = 0x4, scoped, tag = 'scoped memory for tpu_custom_call.1']
    #allocation6 [shape = 'u8[4096]{0}', space=vmem, size = 0x1000, scoped, tag = 'input window, operand 1, single buffered']
    #allocation7 [shape = 's32[1]{0}', space=sflag, size = 0x4, scoped, tag = 'scoped memory for tpu_custom_call.1']
    #allocation8 [shape = 'u8[16384]{0}', space=vmem, size = 0x4000, scoped, tag = 'input window, operand 2, single buffered']
    #allocation9 [shape = 'u8[16384]{0}', space=vmem, size = 0x4000, scoped, tag = 'input window, operand 4, single buffered']
    #allocation10 [shape = 's32[1]{0}', space=sflag, size = 0x4, scoped, tag = 'scoped memory for tpu_custom_call.1']
    #allocation11 [shape = 'u8[512]{0}', space=vmem, size = 0x400, scoped, tag = 'output window, operand 0, single buffered']
    %13 = vsyncpa [#allocation4], 0
    %14 = vsyncpa [#allocation7], 0
    %15 = vsyncpa [#allocation10], 0
    %16 = vsyncpa [#allocation5], 0
    // Predicated region
    $region2: #{tpu_custom_call.1} parent=1 // pred_check
      _
    $region3: #{tpu_custom_call.1} parent=1 // pred_check_branch
      %18 = sbr.rel (0) target = $region5
    $region4: #{tpu_custom_call.1} parent=1 // pred_region
      %s20 = ssub.s32 128, 128
      %21 = vsyncadd [#allocation4], %s20
      %s23 = sshll.u32 [#allocation3], 4
      %s24 = int_to_ptr.vmem [resolvable:$true] %s23
      %26 = dma.hbm_to_vmem [thread:$0]  %s0, 128, %s24, [#allocation4]
    $region5: #{tpu_custom_call.1} parent=1 // pred_fallthru
      _
    // Predicated region
    $region6: #{tpu_custom_call.1} parent=1 // pred_check
      _
    $region7: #{tpu_custom_call.1} parent=1 // pred_check_branch
      %28 = sbr.rel (0) target = $region9
    $region8: #{tpu_custom_call.1} parent=1 // pred_region
      %s30 = ssub.s32 128, 128
      %31 = vsyncadd [#allocation7], %s30
      %s33 = sshll.u32 [#allocation6], 4
      %s34 = int_to_ptr.vmem [resolvable:$true] %s33
      %36 = dma.hbm_to_vmem [thread:$0]  %s1, 128, %s34, [#allocation7]
    $region9: #{tpu_custom_call.1} parent=1 // pred_fallthru
      _
    // Predicated region
    $region10: #{tpu_custom_call.1} parent=1 // pred_check
      _
    $region11: #{tpu_custom_call.1} parent=1 // pred_check_branch
      %38 = sbr.rel (0) target = $region13
    $region12: #{tpu_custom_call.1} parent=1 // pred_region
      %s40 = ssub.s32 512, 512
      %41 = vsyncadd [#allocation7], %s40
      %s42 = sshll.u32 [#allocation8], 4
      %s43 = int_to_ptr.vmem [resolvable:$true] %s42
      %48 = dma.hbm_to_vmem [thread:$0]  %s2, 512, %s43, [#allocation7], 128, 128, 8
    $region13: #{tpu_custom_call.1} parent=1 // pred_fallthru
      _
    // Predicated region
    $region14: #{tpu_custom_call.1} parent=1 // pred_check
      _
    $region15: #{tpu_custom_call.1} parent=1 // pred_check_branch
      %50 = sbr.rel (0) target = $region17
    $region16: #{tpu_custom_call.1} parent=1 // pred_region
      _
    $region17: #{tpu_custom_call.1} parent=1 // pred_fallthru
      _
    // Predicated region
    $region18: #{tpu_custom_call.1} parent=1 // pred_check
      _
    $region19: #{tpu_custom_call.1} parent=1 // pred_check_branch
      %52 = sbr.rel (0) target = $region21
    $region20: #{tpu_custom_call.1} parent=1 // pred_region
      %s54 = ssub.s32 512, 512
      %55 = vsyncadd [#allocation10], %s54
      %s56 = sshll.u32 [#allocation9], 4
      %s57 = int_to_ptr.vmem [resolvable:$true] %s56
      %62 = dma.hbm_to_vmem [thread:$0]  %s4, 512, %s57, [#allocation10], 128, 128, 8
    $region21: #{tpu_custom_call.1} parent=1 // pred_fallthru
      _
    // Predicated region
    $region22: #{tpu_custom_call.1} parent=1 // pred_check
      _
    $region23: #{tpu_custom_call.1} parent=1 // pred_check_branch
      %64 = sbr.rel (0) target = $region25
    $region24: #{tpu_custom_call.1} parent=1 // pred_region
      _
    $region25: #{tpu_custom_call.1} parent=1 // pred_fallthru
      _
    // Predicated region
    $region26: #{tpu_custom_call.1} parent=1 // pred_check
      _
    $region27: #{tpu_custom_call.1} parent=1 // pred_check_branch
      %66 = sbr.rel (0) target = $region29
    $region28: #{tpu_custom_call.1} parent=1 // pred_region
      _
    $region29: #{tpu_custom_call.1} parent=1 // pred_fallthru
      _
    // Predicated region
    $region30: #{tpu_custom_call.1} parent=1 // pred_check
      _
    $region31: #{tpu_custom_call.1} parent=1 // pred_check_branch
      %68 = sbr.rel (0) target = $region33
    $region32: #{tpu_custom_call.1} parent=1 // pred_region
      %69 = dma.done [#allocation4], 128
    $region33: #{tpu_custom_call.1} parent=1 // pred_fallthru
      _
    // Predicated region
    $region34: #{tpu_custom_call.1} parent=1 // pred_check
      _
    $region35: #{tpu_custom_call.1} parent=1 // pred_check_branch
      %71 = sbr.rel (0) target = $region37
    $region36: #{tpu_custom_call.1} parent=1 // pred_region
      %72 = dma.done [#allocation7], 128
    $region37: #{tpu_custom_call.1} parent=1 // pred_fallthru
      _
    // Predicated region
    $region38: #{tpu_custom_call.1} parent=1 // pred_check
      _
    $region39: #{tpu_custom_call.1} parent=1 // pred_check_branch
      %74 = sbr.rel (0) target = $region41
    $region40: #{tpu_custom_call.1} parent=1 // pred_region
      %75 = dma.done [#allocation7], 512
    $region41: #{tpu_custom_call.1} parent=1 // pred_fallthru
      _
    // Predicated region
    $region42: #{tpu_custom_call.1} parent=1 // pred_check
      _
    $region43: #{tpu_custom_call.1} parent=1 // pred_check_branch
      %77 = sbr.rel (0) target = $region45
    $region44: #{tpu_custom_call.1} parent=1 // pred_region
      %78 = dma.done [#allocation10], 512
    $region45: #{tpu_custom_call.1} parent=1 // pred_fallthru
      _
    %v79 = vld [vmem:[#allocation3] sm:$0xff]
    %v80 = vld [vmem:[#allocation8] sm:$0xff]
    %v81 = vld [vmem:[#allocation8 + $0x8] sm:$0xff]
    %v82 = vld [vmem:[#allocation8 + $0x10] sm:$0xff]
    %v83 = vld [vmem:[#allocation8 + $0x18] sm:$0xff]
    %v84 = vld [vmem:[%s3] sm:$0x1]
    %v86 = vlaneseq
    %v87 = vshrl.u32 %v86, 7
    %v88 = vsub.s32 0, %v87
    %v89 = vrot.slane %v84, %v88
    %vm91 = vcmask 261120
    %v93 = vsel %vm91, %v79, 0
    %v96 = vsel %vm91, %v80, 0
    %v99 = vsel %vm91, %v81, 0
    %v102 = vsel %vm91, %v82, 0
    %v105 = vsel %vm91, %v83, 0
    %107 = vmatprep.subr.mxu0 0.0
    %108 = vmatpush1.xpose.msra.mxu0 0.0
    %109 = vmatprep.subr.mxu0 0.0
    %110 = vmatpush1.xpose.msra.mxu0 0.0
    %111 = vmatprep.subr.mxu0 0.0
    %112 = vmatpush1.xpose.msra.mxu0 0.0
    %113 = vmatprep.subr.mxu0 0.0
    %114 = vmatpush1.xpose.msra.mxu0 0.0
    %115 = vmatprep.subr.mxu0 0.0
    %116 = vmatpush1.xpose.msra.mxu0 0.0
    %117 = vmatprep.subr.mxu0 0.0
    %118 = vmatpush1.xpose.msra.mxu0 0.0
    %119 = vmatprep.subr.mxu0 0.0
    %120 = vmatpush1.xpose.msra.mxu0 0.0
    %121 = vmatprep.subr.mxu0 0.0
    %122 = vmatpush1.xpose.msra.mxu0 0.0
    %123 = vmatprep.subr.mxu0 0.0
    %124 = vmatpush1.xpose.msra.mxu0 0.0
    %125 = vmatprep.subr.mxu0 0.0
    %126 = vmatpush1.xpose.msra.mxu0 0.0
    %127 = vmatprep.subr.mxu0 0.0
    %128 = vmatpush1.xpose.msra.mxu0 0.0
    %129 = vmatprep.subr.mxu0 0.0
    %130 = vmatpush1.xpose.msra.mxu0 0.0
    %131 = vmatprep.subr.mxu0 0.0
    %132 = vmatpush1.xpose.msra.mxu0 %v105
    %133 = vmatprep.subr.mxu0 0.0
    %134 = vmatpush1.xpose.msra.mxu0 %v102
    %135 = vmatprep.subr.mxu0 0.0
    %136 = vmatpush1.xpose.msra.mxu0 %v99
    %137 = vmatprep.subr.mxu0 0.0
    %138 = vmatpush1.xpose.msra.mxu0 %v96
    %139 = vmatprep.subr.mxu0 0.0
    %140 = vmatpush2.xpose.msra.mxu0 0.0
    %141 = vmatprep.subr.mxu0 0.0
    %142 = vmatpush2.xpose.msra.mxu0 0.0
    %143 = vmatprep.subr.mxu0 0.0
    %144 = vmatpush2.xpose.msra.mxu0 0.0
    %145 = vmatprep.subr.mxu0 0.0
    %146 = vmatpush2.xpose.msra.mxu0 0.0
    %147 = vmatprep.subr.mxu0 0.0
    %148 = vmatpush2.xpose.msra.mxu0 0.0
    %149 = vmatprep.subr.mxu0 0.0
    %150 = vmatpush2.xpose.msra.mxu0 0.0
    %151 = vmatprep.subr.mxu0 0.0
    %152 = vmatpush2.xpose.msra.mxu0 0.0
    %153 = vmatprep.subr.mxu0 0.0
    %154 = vmatpush2.xpose.msra.mxu0 0.0
    %155 = vmatprep.subr.mxu0 0.0
    %156 = vmatpush2.xpose.msra.mxu0 0.0
    %157 = vmatprep.subr.mxu0 0.0
    %158 = vmatpush2.xpose.msra.mxu0 0.0
    %159 = vmatprep.subr.mxu0 0.0
    %160 = vmatpush2.xpose.msra.mxu0 0.0
    %161 = vmatprep.subr.mxu0 0.0
    %162 = vmatpush2.xpose.msra.mxu0 0.0
    %163 = vmatprep.subr.mxu0 0.0
    %164 = vmatpush2.xpose.msra.mxu0 0.0
    %165 = vmatprep.subr.mxu0 0.0
    %166 = vmatpush2.xpose.msra.mxu0 0.0
    %167 = vmatprep.subr.mxu0 0.0
    %168 = vmatpush2.xpose.msra.mxu0 0.0
    %169 = vmatprep.subr.mxu0 0.0
    %170 = vmatpush2.xpose.msra.mxu0 0.0
    %171 = vmatprep.mubr.f32.mxu0 0.0
    %172 = vmatmul.mubr.f32.gmra.mxu0 %v93
    %v173 = vpop.f32.mrf.mxu0
    %v174 = vadd.f32 %v89, %v173
    %v175 = vpop.f32.mrf.mxu0
    %176 = vdwg.mxu0
    %v177 = vld [vmem:[#allocation6] sm:$0xff]
    %v178 = vld [vmem:[#allocation9] sm:$0xff]
    %v179 = vld [vmem:[#allocation9 + $0x8] sm:$0xff]
    %v180 = vld [vmem:[#allocation9 + $0x10] sm:$0xff]
    %v181 = vld [vmem:[#allocation9 + $0x18] sm:$0xff]
    %v182 = vld [vmem:[%s5] sm:$0x1]
    %v184 = vlaneseq
    %v185 = vshrl.u32 %v184, 7
    %v186 = vsub.s32 0, %v185
    %v187 = vrot.slane %v182, %v186
    %v190 = vsel %vm91, %v177, 0
    %v193 = vsel %vm91, %v178, 0
    %v196 = vsel %vm91, %v179, 0
    %v199 = vsel %vm91, %v180, 0
    %v202 = vsel %vm91, %v181, 0
    %204 = vmatprep.subr.mxu0 0.0
    %205 = vmatpush1.xpose.msra.mxu0 0.0
    %206 = vmatprep.subr.mxu0 0.0
    %207 = vmatpush1.xpose.msra.mxu0 0.0
    %208 = vmatprep.subr.mxu0 0.0
    %209 = vmatpush1.xpose.msra.mxu0 0.0
    %210 = vmatprep.subr.mxu0 0.0
    %211 = vmatpush1.xpose.msra.mxu0 0.0
    %212 = vmatprep.subr.mxu0 0.0
    %213 = vmatpush1.xpose.msra.mxu0 0.0
    %214 = vmatprep.subr.mxu0 0.0
    %215 = vmatpush1.xpose.msra.mxu0 0.0
    %216 = vmatprep.subr.mxu0 0.0
    %217 = vmatpush1.xpose.msra.mxu0 0.0
    %218 = vmatprep.subr.mxu0 0.0
    %219 = vmatpush1.xpose.msra.mxu0 0.0
    %220 = vmatprep.subr.mxu0 0.0
    %221 = vmatpush1.xpose.msra.mxu0 0.0
    %222 = vmatprep.subr.mxu0 0.0
    %223 = vmatpush1.xpose.msra.mxu0 0.0
    %224 = vmatprep.subr.mxu0 0.0
    %225 = vmatpush1.xpose.msra.mxu0 0.0
    %226 = vmatprep.subr.mxu0 0.0
    %227 = vmatpush1.xpose.msra.mxu0 0.0
    %228 = vmatprep.subr.mxu0 0.0
    %229 = vmatpush1.xpose.msra.mxu0 %v202
    %230 = vmatprep.subr.mxu0 0.0
    %231 = vmatpush1.xpose.msra.mxu0 %v199
    %232 = vmatprep.subr.mxu0 0.0
    %233 = vmatpush1.xpose.msra.mxu0 %v196
    %234 = vmatprep.subr.mxu0 0.0
    %235 = vmatpush1.xpose.msra.mxu0 %v193
    %236 = vmatprep.subr.mxu0 0.0
    %237 = vmatpush2.xpose.msra.mxu0 0.0
    %238 = vmatprep.subr.mxu0 0.0
    %239 = vmatpush2.xpose.msra.mxu0 0.0
    %240 = vmatprep.subr.mxu0 0.0
    %241 = vmatpush2.xpose.msra.mxu0 0.0
    %242 = vmatprep.subr.mxu0 0.0
    %243 = vmatpush2.xpose.msra.mxu0 0.0
    %244 = vmatprep.subr.mxu0 0.0
    %245 = vmatpush2.xpose.msra.mxu0 0.0
    %246 = vmatprep.subr.mxu0 0.0
    %247 = vmatpush2.xpose.msra.mxu0 0.0
    %248 = vmatprep.subr.mxu0 0.0
    %249 = vmatpush2.xpose.msra.mxu0 0.0
    %250 = vmatprep.subr.mxu0 0.0
    %251 = vmatpush2.xpose.msra.mxu0 0.0
    %252 = vmatprep.subr.mxu0 0.0
    %253 = vmatpush2.xpose.msra.mxu0 0.0
    %254 = vmatprep.subr.mxu0 0.0
    %255 = vmatpush2.xpose.msra.mxu0 0.0
    %256 = vmatprep.subr.mxu0 0.0
    %257 = vmatpush2.xpose.msra.mxu0 0.0
    %258 = vmatprep.subr.mxu0 0.0
    %259 = vmatpush2.xpose.msra.mxu0 0.0
    %260 = vmatprep.subr.mxu0 0.0
    %261 = vmatpush2.xpose.msra.mxu0 0.0
    %262 = vmatprep.subr.mxu0 0.0
    %263 = vmatpush2.xpose.msra.mxu0 0.0
    %264 = vmatprep.subr.mxu0 0.0
    %265 = vmatpush2.xpose.msra.mxu0 0.0
    %266 = vmatprep.subr.mxu0 0.0
    %267 = vmatpush2.xpose.msra.mxu0 0.0
    %268 = vmatprep.mubr.f32.mxu0 0.0
    %269 = vmatmul.mubr.f32.gmra.mxu0 %v190
    %v270 = vpop.f32.mrf.mxu0
    %v271 = vadd.f32 %v187, %v270
    %v272 = vpop.f32.mrf.mxu0
    %273 = vdwg.mxu0
    %v274 = vmul.f32 %v174, %v174
    %v275 = vsel %vm91, %v274, 0.0
    %276 = vadd.xlane.f32.xlu0 %v275
    %v277 = vpop.xlane.xlu0 %276
    %v278 = vrsqrt.pop %v277
    %v279 = vmul.f32 %v174, %v278
    %v280 = vmul.f32 %v271, %v271
    %v281 = vsel %vm91, %v280, 0.0
    %282 = vadd.xlane.f32.xlu0 %v281
    %v283 = vpop.xlane.xlu0 %282
    %v284 = vrsqrt.pop %v283
    %v285 = vmul.f32 %v271, %v284
    %s286 = sld [smem:[#allocation2]]
    %v287 = vstv %s286
    %v288 = vmul.f32 %v287, 1.442695
    %v289 = vpow.pop %v288
    %s290 = vtos %v289
    %v292 = vsel %vm91, %v285, 0
    %v295 = vsel %vm91, %v279, 0
    %297 = vmatprep.subr.mxu0 0.0
    %298 = vmatpush1.xpose.msra.mxu0 0.0
    %299 = vmatprep.subr.mxu0 0.0
    %300 = vmatpush1.xpose.msra.mxu0 0.0
    %301 = vmatprep.subr.mxu0 0.0
    %302 = vmatpush1.xpose.msra.mxu0 0.0
    %303 = vmatprep.subr.mxu0 0.0
    %304 = vmatpush1.xpose.msra.mxu0 0.0
    %305 = vmatprep.subr.mxu0 0.0
    %306 = vmatpush1.xpose.msra.mxu0 0.0
    %307 = vmatprep.subr.mxu0 0.0
    %308 = vmatpush1.xpose.msra.mxu0 0.0
    %309 = vmatprep.subr.mxu0 0.0
    %310 = vmatpush1.xpose.msra.mxu0 0.0
    %311 = vmatprep.subr.mxu0 0.0
    %312 = vmatpush1.xpose.msra.mxu0 0.0
    %313 = vmatprep.subr.mxu0 0.0
    %314 = vmatpush1.xpose.msra.mxu0 0.0
    %315 = vmatprep.subr.mxu0 0.0
    %316 = vmatpush1.xpose.msra.mxu0 0.0
    %317 = vmatprep.subr.mxu0 0.0
    %318 = vmatpush1.xpose.msra.mxu0 0.0
    %319 = vmatprep.subr.mxu0 0.0
    %320 = vmatpush1.xpose.msra.mxu0 0.0
    %321 = vmatprep.subr.mxu0 0.0
    %322 = vmatpush1.xpose.msra.mxu0 0.0
    %323 = vmatprep.subr.mxu0 0.0
    %324 = vmatpush1.xpose.msra.mxu0 0.0
    %325 = vmatprep.subr.mxu0 0.0
    %326 = vmatpush1.xpose.msra.mxu0 0.0
    %327 = vmatprep.subr.mxu0 0.0
    %328 = vmatpush1.xpose.msra.mxu0 %v295
    %329 = vmatprep.subr.mxu0 0.0
    %330 = vmatpush2.xpose.msra.mxu0 0.0
    %331 = vmatprep.subr.mxu0 0.0
    %332 = vmatpush2.xpose.msra.mxu0 0.0
    %333 = vmatprep.subr.mxu0 0.0
    %334 = vmatpush2.xpose.msra.mxu0 0.0
    %335 = vmatprep.subr.mxu0 0.0
    %336 = vmatpush2.xpose.msra.mxu0 0.0
    %337 = vmatprep.subr.mxu0 0.0
    %338 = vmatpush2.xpose.msra.mxu0 0.0
    %339 = vmatprep.subr.mxu0 0.0
    %340 = vmatpush2.xpose.msra.mxu0 0.0
    %341 = vmatprep.subr.mxu0 0.0
    %342 = vmatpush2.xpose.msra.mxu0 0.0
    %343 = vmatprep.subr.mxu0 0.0
    %344 = vmatpush2.xpose.msra.mxu0 0.0
    %345 = vmatprep.subr.mxu0 0.0
    %346 = vmatpush2.xpose.msra.mxu0 0.0
    %347 = vmatprep.subr.mxu0 0.0
    %348 = vmatpush2.xpose.msra.mxu0 0.0
    %349 = vmatprep.subr.mxu0 0.0
    %350 = vmatpush2.xpose.msra.mxu0 0.0
    %351 = vmatprep.subr.mxu0 0.0
    %352 = vmatpush2.xpose.msra.mxu0 0.0
    %353 = vmatprep.subr.mxu0 0.0
    %354 = vmatpush2.xpose.msra.mxu0 0.0
    %355 = vmatprep.subr.mxu0 0.0
    %356 = vmatpush2.xpose.msra.mxu0 0.0
    %357 = vmatprep.subr.mxu0 0.0
    %358 = vmatpush2.xpose.msra.mxu0 0.0
    %359 = vmatprep.subr.mxu0 0.0
    %360 = vmatpush2.xpose.msra.mxu0 0.0
    %361 = vmatprep.mubr.f32.mxu0 0.0
    %362 = vmatmul.mubr.f32.gmra.mxu0 %v292
    %v363 = vpop.f32.mrf.mxu0
    %v364 = vadd.f32 0.0, %v363
    %v365 = vpop.f32.mrf.mxu0
    %366 = vdwg.mxu0
    %v367 = vstv %s290
    %v368 = vmul.f32 %v367, %v364
    %v369 = vmul.f32 %v285, %v279
    %v370 = vsel %vm91, %v369, 0.0
    %371 = vadd.xlane.f32.xlu0 %v370
    %v372 = vpop.xlane.xlu0 %371
    %v373 = vmul.f32 %v367, %v372
    %vm374 = vcmask 64512
    %v375 = vsel %vm374, %v368, -inf
    %376 = vmax.xlane.f32.xlu0 %v375
    %v377 = vpop.xlane.xlu0 %376
    %v378 = vsub.f32 %v368, %v377
    %v379 = vmul.f32 %v378, 1.442695
    %v380 = vpow.pop %v379
    %v381 = vsel %vm374, %v380, 0.0
    %382 = vadd.xlane.f32.xlu0 %v381
    %v383 = vpop.xlane.xlu0 %382
    %v384 = vlog2.pop %v383
    %v385 = vmul.f32 %v384, 0.6931472
    %v386 = vadd.f32 %v377, %v385
    %v387 = vrot.slane %v375, 4
    %v388 = vmax.f32 %v375, %v387
    %v389 = vrot.slane %v388, 2
    %v390 = vmax.f32 %v388, %v389
    %v391 = vrot.slane %v390, 1
    %v392 = vmax.f32 %v390, %v391
    %v393 = vsub.f32 %v368, %v392
    %v394 = vmul.f32 %v393, 1.442695
    %v395 = vpow.pop %v394
    %v396 = vsel %vm374, %v395, 0.0
    %v397 = vrot.slane %v396, 4
    %v398 = vadd.f32 %v396, %v397
    %v399 = vrot.slane %v398, 2
    %v400 = vadd.f32 %v398, %v399
    %v401 = vrot.slane %v400, 1
    %v402 = vadd.f32 %v400, %v401
    %v403 = vlog2.pop %v402
    %v404 = vmul.f32 %v403, 0.6931472
    %v405 = vadd.f32 %v392, %v404
    %v406 = vrot.slane %v386, 4
    %v407 = vadd.f32 %v386, %v406
    %v408 = vrot.slane %v407, 2
    %v409 = vadd.f32 %v407, %v408
    %v410 = vrot.slane %v409, 1
    %v411 = vadd.f32 %v409, %v410
    %v412 = vsel %vm374, %v405, 0.0
    %413 = vadd.xlane.f32.xlu0 %v412
    %v414 = vpop.xlane.xlu0 %413
    %v415 = vrot.slane %v373, 4
    %v416 = vadd.f32 %v373, %v415
    %v417 = vrot.slane %v416, 2
    %v418 = vadd.f32 %v416, %v417
    %v419 = vrot.slane %v418, 1
    %v420 = vadd.f32 %v418, %v419
    %v421 = vadd.f32 %v411, %v414
    %v422 = vmul.f32 %v420, 2.0
    %v423 = vsub.f32 %v421, %v422
    %v424 = vmul.f32 %v423, 0.5
    %v425 = vmul.f32 %v424, 0.125
    %vm426 = vcmask 0
    %427 = vst.msk [vmem:[#allocation11] sm:$0x1] %vm426, %v425
    // Predicated region
    $region46: #{tpu_custom_call.1} parent=1 // pred_check
      _
    $region47: #{tpu_custom_call.1} parent=1 // pred_check_branch
      %429 = sbr.rel (0) target = $region49
    $region48: #{tpu_custom_call.1} parent=1 // pred_region
      %s431 = ssub.s32 16, 16
      %432 = vsyncadd [#allocation5], %s431
      %s434 = sshll.u32 [#allocation11], 4
      %s435 = int_to_ptr.vmem [resolvable:$true] %s434
      %437 = dma.vmem_to_hbm [thread:$0]  %s435, 16, %s7, [#allocation5]
    $region49: #{tpu_custom_call.1} parent=1 // pred_fallthru
      _
    // Predicated region
    $region50: #{tpu_custom_call.1} parent=1 // pred_check
      _
    $region51: #{tpu_custom_call.1} parent=1 // pred_check_branch
      %439 = sbr.rel (0) target = $region53
    $region52: #{tpu_custom_call.1} parent=1 // pred_region
      %440 = dma.done [#allocation5], 16
    $region53: #{tpu_custom_call.1} parent=1 // pred_fallthru
      _
    %441 = vsyncpa [#allocation4], 1
    %442 = vsyncpa [#allocation7], 1
    %443 = vsyncpa [#allocation10], 1
    %444 = vsyncpa [#allocation5], 1

</llo_original>
